<compile_context>
chip_gen: v7x
topology: tpu7x:2x2x1
jax: 0.10.0
libtpu: 0.0.40
codegen_flags: <defaults>
</compile_context>

<pallas_src>
import math

import jax
import jax.numpy as jnp
import numpy as np
from jax import lax
from jax.experimental import pallas as pl
from jax.experimental.pallas import tpu as pltpu


def mlp_miner_kernel(x_ref, w1_ref, w2_ref, b2_ref, o_ref):
    # x_ref: (tb, lane) lane-dense activation tile (lane = pack * N_stocks)
    # w1_ref: (lane, pack*H) block-diag packed W1^T; w2_ref: (pack*H, lane) packed W2^T
    x = x_ref[...].astype(w1_ref.dtype)

    # hidden = X @ W1^T (bias=False), expressed on the packed lane-dense layout.
    h = lax.dot_general(x, w1_ref[...], (((1,), (0,)), ((), ())),
                        preferred_element_type=jnp.float32)
    h = jnp.tanh(h)  # act1 = Tanh in f32 (EUP; v5e has no bf16 VPU/EUP)

    # Dropout(p=0.5) in eval mode == identity.
    # TODO(synk): training-mode dropout not implemented.

    # out = h @ W2^T + b2, f32 accumulate, f32 bias; store is a full-lane (dense) vst.
    out = lax.dot_general(h.astype(w2_ref.dtype), w2_ref[...], (((1,), (0,)), ((), ())),
                          preferred_element_type=jnp.float32)
    out = out + b2_ref[...]
    o_ref[...] = out.astype(o_ref.dtype)


def _choose_pack(n_stocks, batch):
    """Pack factor so the last dim of the kernel tiles becomes a dense 128-lane row."""
    if 128 % n_stocks == 0:
        pack = 128 // n_stocks
        if batch % pack == 0:
            return pack
    return 1  # fallback: plain (B, N) layout (masked stores, still correct)


def prepare_params(w1, w2, b2, *, pack):
    """One-time param prep (NOT per forward call): transpose to canonical MXU layout
    and pack `pack` copies block-diagonally so the kernel works on lane-dense tiles.

    w1: (H, N) PyTorch Linear layout; w2: (N, H); b2: (N,).
    Returns w1_big: (pack*N, pack*H), w2_big: (pack*H, pack*N), b2_big: (1, pack*N).
    """
    eye = jnp.eye(pack, dtype=jnp.float32)
    w1_big = jnp.kron(eye, w1.T.astype(jnp.float32))   # (pack*N, pack*H)
    w2_big = jnp.kron(eye, w2.T.astype(jnp.float32))   # (pack*H, pack*N)
    b2_big = jnp.tile(b2.reshape(1, -1).astype(jnp.float32), (1, pack))
    return w1_big, w2_big, b2_big


def mlp_miner_forward(x, w1_big, w2_big, b2_big, *, row_tile=2048):
    """x: (B, N_stocks). Packed params from prepare_params. Returns (B, N_stocks) f32.

    row_tile is in *dense* rows (each dense row = `pack` samples). Default keeps the
    whole call in one grid step for typical batches; double-buffered in+out tiles at
    row_tile=2048 are ~4 MiB, far under the 32 MiB scoped-VMEM default (v7x-safe).
    """
    B, N = x.shape
    lane = b2_big.shape[1]
    pack = lane // N
    assert lane == pack * N and B % pack == 0
    assert w1_big.shape[0] == lane and w2_big.shape[1] == lane

    Bd = B // pack
    x_dense = x.reshape(Bd, lane)   # contiguous row-major reshape: free (bitcast) in XLA

    if Bd <= row_tile:
        tb = Bd                      # full-dim block: always a legal BlockSpec
        grid = (1,)
    else:
        tb = max(8, (row_tile // 8) * 8)     # multiple-of-8 sublane tile
        grid = (pl.cdiv(Bd, tb),)            # ragged last block handled by Pallas

    out_dense = pl.pallas_call(
        mlp_miner_kernel,
        out_shape=jax.ShapeDtypeStruct((Bd, lane), jnp.float32),
        grid=grid,
        in_specs=[
            pl.BlockSpec((tb, lane), lambda i: (i, 0)),        # x: tiled rows, pipelined
            pl.BlockSpec(w1_big.shape, lambda i: (0, 0)),      # packed W1: resident
            pl.BlockSpec(w2_big.shape, lambda i: (0, 0)),      # packed W2: resident
            pl.BlockSpec(b2_big.shape, lambda i: (0, 0)),      # packed bias: resident
        ],
        out_specs=pl.BlockSpec((tb, lane), lambda i: (i, 0)),  # lane-dense stores
        compiler_params=pltpu.CompilerParams(
            dimension_semantics=("parallel",),  # shards rows across v7x's 2 TCs if grid>1
        ),
    )(x_dense, w1_big, w2_big, b2_big)

    return out_dense.reshape(B, N)   # free contiguous reshape back


def init_params(key, n_stocks, hidden_dim):
    """Deterministic init mirroring the PyTorch module's __init__."""
    k1, k2, k3 = jax.random.split(key, 3)

    # hidden: kaiming_uniform_(mode='fan_in', nonlinearity='tanh')
    gain = 5.0 / 3.0
    bound1 = gain * math.sqrt(3.0 / n_stocks)
    w1 = jax.random.uniform(k1, (hidden_dim, n_stocks), jnp.float32,
                            minval=-bound1, maxval=bound1)

    # output: default PyTorch Linear init, fan_in = hidden_dim
    bound2 = 1.0 / math.sqrt(hidden_dim)
    w2 = jax.random.uniform(k2, (n_stocks, hidden_dim), jnp.float32,
                            minval=-bound2, maxval=bound2)
    b2 = jax.random.uniform(k3, (n_stocks,), jnp.float32,
                            minval=-bound2, maxval=bound2)
    return w1, w2, b2


def _reference(x, w1, w2, b2):
    return jnp.tanh(x @ w1.T) @ w2.T + b2   # dropout in eval mode == identity


if __name__ == "__main__":
    key = jax.random.PRNGKey(0)
    kx, kp = jax.random.split(key)

    B = 256        # many time windows folded into one call (single grid step)
    N_STOCKS = 32  # feature dim of the Linear layers
    HIDDEN = 16    # model_cfg default HIDDEN_DIM

    w1, w2, b2 = init_params(kp, N_STOCKS, HIDDEN)

    # --- Main path: lane-dense packed layout (pack=4), single grid step. ---
    x = jax.random.normal(kx, (B, N_STOCKS), jnp.float32)
    ref = _reference(x, w1, w2, b2)

    pack = _choose_pack(N_STOCKS, B)
    params = prepare_params(w1, w2, b2, pack=pack)

    out = jax.block_until_ready(mlp_miner_forward(x, *params))
    np.testing.assert_allclose(np.asarray(out), np.asarray(ref), rtol=2e-5, atol=2e-5)

    # --- Multi-step grid path (row_tile smaller than the dense batch). ---
    out_multi = jax.block_until_ready(mlp_miner_forward(x, *params, row_tile=16))
    np.testing.assert_allclose(np.asarray(out_multi), np.asarray(ref),
                               rtol=2e-5, atol=2e-5)

    # --- Fallback path: batch not divisible by pack -> plain (B, N) layout. ---
    B2 = 250
    x2 = jax.random.normal(jax.random.fold_in(kx, 1), (B2, N_STOCKS), jnp.float32)
    ref2 = _reference(x2, w1, w2, b2)
    pack2 = _choose_pack(N_STOCKS, B2)          # == 1
    params2 = prepare_params(w1, w2, b2, pack=pack2)
    out2 = jax.block_until_ready(mlp_miner_forward(x2, *params2))
    np.testing.assert_allclose(np.asarray(out2), np.asarray(ref2), rtol=2e-5, atol=2e-5)

    print("KERNEL_OK")
</pallas_src>

<mosaic_0001>
module attributes {stable_mosaic.version = 11 : i64} {
  func.func @mlp_miner_kernel(%arg0: i32, %arg1: memref<64x128xf32, #tpu.memory_space<vmem>>, %arg2: memref<128x64xf32, #tpu.memory_space<vmem>>, %arg3: memref<64x128xf32, #tpu.memory_space<vmem>>, %arg4: memref<1x128xf32, #tpu.memory_space<vmem>>, %arg5: memref<64x128xf32, #tpu.memory_space<vmem>>) attributes {dimension_semantics = [#tpu.dimension_semantics<parallel>], iteration_bounds = array<i64: 1>, scalar_prefetch = 0 : i64, scratch_operands = 0 : i64, tpu.core_type = #tpu.core_type<tc>, window_params = [{transform_indices = @transform_0, window_bounds = array<i64: 64, 128>}, {pipeline_mode = #tpu.pipeline_mode<synchronous>, transform_indices = @transform_1, window_bounds = array<i64: 128, 64>}, {pipeline_mode = #tpu.pipeline_mode<synchronous>, transform_indices = @transform_2, window_bounds = array<i64: 64, 128>}, {pipeline_mode = #tpu.pipeline_mode<synchronous>, transform_indices = @transform_3, window_bounds = array<i64: 1, 128>}, {transform_indices = @transform_4, window_bounds = array<i64: 64, 128>}]} {
    %c0 = arith.constant 0 : index
    %c0_0 = arith.constant 0 : index
    %0 = vector.load %arg1[%c0, %c0_0] : memref<64x128xf32, #tpu.memory_space<vmem>>, vector<64x128xf32>
    %c0_1 = arith.constant 0 : index
    %c0_2 = arith.constant 0 : index
    %1 = vector.load %arg2[%c0_1, %c0_2] : memref<128x64xf32, #tpu.memory_space<vmem>>, vector<128x64xf32>
    %cst = arith.constant dense<0.000000e+00> : vector<64x64xf32>
    %2 = tpu.matmul %0, %1, %cst {dimension_numbers = #tpu.dot_dimension_numbers<[1], [0], [0], [1], [0, 0, 1, 1], [], []>} : vector<64x128xf32>, vector<128x64xf32>, vector<64x64xf32> -> vector<64x64xf32>
    %3 = math.tanh %2 : vector<64x64xf32>
    %c0_3 = arith.constant 0 : index
    %c0_4 = arith.constant 0 : index
    %4 = vector.load %arg3[%c0_3, %c0_4] : memref<64x128xf32, #tpu.memory_space<vmem>>, vector<64x128xf32>
    %cst_5 = arith.constant dense<0.000000e+00> : vector<64x128xf32>
    %5 = tpu.matmul %3, %4, %cst_5 {dimension_numbers = #tpu.dot_dimension_numbers<[1], [0], [0], [1], [0, 0, 1, 1], [], []>} : vector<64x64xf32>, vector<64x128xf32>, vector<64x128xf32> -> vector<64x128xf32>
    %c0_6 = arith.constant 0 : index
    %c0_7 = arith.constant 0 : index
    %6 = vector.load %arg4[%c0_6, %c0_7] : memref<1x128xf32, #tpu.memory_space<vmem>>, vector<1x128xf32>
    %7 = vector.broadcast %6 : vector<1x128xf32> to vector<64x128xf32>
    %8 = arith.addf %5, %7 : vector<64x128xf32>
    %c0_8 = arith.constant 0 : index
    %c0_9 = arith.constant 0 : index
    %9 = vector.load %arg5[%c0_8, %c0_9] : memref<64x128xf32, #tpu.memory_space<vmem>>, vector<64x128xf32>
    tpu.vector_store %arg5[%c0_8, %c0_9], %8 {strides = array<i32>} : memref<64x128xf32, #tpu.memory_space<vmem>>, vector<64x128xf32>,
    return
  }
  func.func @transform_0(%arg0: i32) -> (i32, i32) {
    %c0_i32 = arith.constant 0 : i32
    %c0_i32_0 = arith.constant 0 : i32
    return %arg0, %c0_i32 : i32, i32
  }
  func.func @transform_1(%arg0: i32) -> (i32, i32) {
    %c0_i32 = arith.constant 0 : i32
    %c0_i32_0 = arith.constant 0 : i32
    %c0_i32_1 = arith.constant 0 : i32
    return %c0_i32, %c0_i32_0 : i32, i32
  }
  func.func @transform_2(%arg0: i32) -> (i32, i32) {
    %c0_i32 = arith.constant 0 : i32
    %c0_i32_0 = arith.constant 0 : i32
    %c0_i32_1 = arith.constant 0 : i32
    return %c0_i32, %c0_i32_0 : i32, i32
  }
  func.func @transform_3(%arg0: i32) -> (i32, i32) {
    %c0_i32 = arith.constant 0 : i32
    %c0_i32_0 = arith.constant 0 : i32
    %c0_i32_1 = arith.constant 0 : i32
    return %c0_i32, %c0_i32_0 : i32, i32
  }
  func.func @transform_4(%arg0: i32) -> (i32, i32) {
    %c0_i32 = arith.constant 0 : i32
    %c0_i32_0 = arith.constant 0 : i32
    return %arg0, %c0_i32 : i32, i32
  }
}

</mosaic_0001>

<llo_original>
// kernel: tpu_custom_call.1
$region0: #{tpu_custom_call.1}
  #allocation0 [shape = 'u32[]', space=smem, size = 0x4, offset = 0x4, fixed_abs, tag = 'smem constant byte address 0x4 - core index']
  #allocation1 [shape = 'u32[144,128]{1,0:T(1,128)}', space=vmem, size = 0x12000, scoped, tag = 'internal scratch']
  %s0 = inlined_call_operand.vmem [shape: f32[64,128], index: 0, kind: input, shape index: {}]
  %s1 = inlined_call_operand.vmem [shape: f32[128,64], index: 1, kind: input, shape index: {}]
  %s2 = inlined_call_operand.vmem [shape: f32[64,128], index: 2, kind: input, shape index: {}]
  %s3 = inlined_call_operand.vmem [shape: f32[1,128], index: 3, kind: input, shape index: {}]
  %s4 = inlined_call_operand.hbm [shape: f32[64,128], index: 4, kind: output, shape index: {}]
  %s5 = sld [smem:[#allocation0]]
  $region26: #{tpu_custom_call.1} parent=0
    _
  %s7 = ssub.s32 1, %s5
  %s8 = scalar_select 0, %s7, %s5
  $region1: #{tpu_custom_call.1} parent=0
    #allocation2 [shape = 'u8[32768]{0}', space=vmem, size = 0x8000, scoped, tag = 'output window, operand 0, single buffered']
    #allocation3 [shape = 's32[1]{0}', space=sflag, size = 0x4, scoped, tag = 'scoped memory for tpu_custom_call.1']
    %9 = vsyncpa [#allocation3], 0
    // Predicated region
    $region2: #{tpu_custom_call.1} parent=1 // pred_check
      _
    $region3: #{tpu_custom_call.1} parent=1 // pred_check_branch
      %11 = sbr.rel (0) target = $region5
    $region4: #{tpu_custom_call.1} parent=1 // pred_region
      _
    $region5: #{tpu_custom_call.1} parent=1 // pred_fallthru
      _
    // Predicated region
    $region6: #{tpu_custom_call.1} parent=1 // pred_check
      _
    $region7: #{tpu_custom_call.1} parent=1 // pred_check_branch
      %13 = sbr.rel (0) target = $region9
    $region8: #{tpu_custom_call.1} parent=1 // pred_region
      _
    $region9: #{tpu_custom_call.1} parent=1 // pred_fallthru
      _
    // Predicated region
    $region10: #{tpu_custom_call.1} parent=1 // pred_check
      _
    $region11: #{tpu_custom_call.1} parent=1 // pred_check_branch
      %15 = sbr.rel (0) target = $region13
    $region12: #{tpu_custom_call.1} parent=1 // pred_region
      _
    $region13: #{tpu_custom_call.1} parent=1 // pred_fallthru
      _
    // Predicated region
    $region14: #{tpu_custom_call.1} parent=1 // pred_check
      _
    $region15: #{tpu_custom_call.1} parent=1 // pred_check_branch
      %17 = sbr.rel (0) target = $region17
    $region16: #{tpu_custom_call.1} parent=1 // pred_region
      _
    $region17: #{tpu_custom_call.1} parent=1 // pred_fallthru
      _
    %v18 = vld [vmem:[%s0] sm:$0xff]
    %v19 = vld [vmem:[%s0 + $0x8] sm:$0xff]
    %v20 = vld [vmem:[%s0 + $0x10] sm:$0xff]
    %v21 = vld [vmem:[%s0 + $0x18] sm:$0xff]
    %v22 = vld [vmem:[%s0 + $0x20] sm:$0xff]
    %v23 = vld [vmem:[%s0 + $0x28] sm:$0xff]
    %v24 = vld [vmem:[%s0 + $0x30] sm:$0xff]
    %v25 = vld [vmem:[%s0 + $0x38] sm:$0xff]
    %v26 = vld [vmem:[%s1] sm:$0xff]
    %v27 = vld [vmem:[%s1 + $0x8] sm:$0xff]
    %v28 = vld [vmem:[%s1 + $0x10] sm:$0xff]
    %v29 = vld [vmem:[%s1 + $0x18] sm:$0xff]
    %v30 = vld [vmem:[%s1 + $0x20] sm:$0xff]
    %v31 = vld [vmem:[%s1 + $0x28] sm:$0xff]
    %v32 = vld [vmem:[%s1 + $0x30] sm:$0xff]
    %v33 = vld [vmem:[%s1 + $0x38] sm:$0xff]
    %v34 = vld [vmem:[%s1 + $0x40] sm:$0xff]
    %v35 = vld [vmem:[%s1 + $0x48] sm:$0xff]
    %v36 = vld [vmem:[%s1 + $0x50] sm:$0xff]
    %v37 = vld [vmem:[%s1 + $0x58] sm:$0xff]
    %v38 = vld [vmem:[%s1 + $0x60] sm:$0xff]
    %v39 = vld [vmem:[%s1 + $0x68] sm:$0xff]
    %v40 = vld [vmem:[%s1 + $0x70] sm:$0xff]
    %v41 = vld [vmem:[%s1 + $0x78] sm:$0xff]
    %42 = vmatprep.subr.mxu0 0.0
    %43 = vmatpush1.msra.mxu0 %v26
    %44 = vmatprep.subr.mxu0 0.0
    %45 = vmatpush1.msra.mxu0 %v27
    %46 = vmatprep.subr.mxu0 0.0
    %47 = vmatpush1.msra.mxu0 %v28
    %48 = vmatprep.subr.mxu0 0.0
    %49 = vmatpush1.msra.mxu0 %v29
    %50 = vmatprep.subr.mxu0 0.0
    %51 = vmatpush1.msra.mxu0 %v30
    %52 = vmatprep.subr.mxu0 0.0
    %53 = vmatpush1.msra.mxu0 %v31
    %54 = vmatprep.subr.mxu0 0.0
    %55 = vmatpush1.msra.mxu0 %v32
    %56 = vmatprep.subr.mxu0 0.0
    %57 = vmatpush1.msra.mxu0 %v33
    %58 = vmatprep.subr.mxu0 0.0
    %59 = vmatpush1.msra.mxu0 %v34
    %60 = vmatprep.subr.mxu0 0.0
    %61 = vmatpush1.msra.mxu0 %v35
    %62 = vmatprep.subr.mxu0 0.0
    %63 = vmatpush1.msra.mxu0 %v36
    %64 = vmatprep.subr.mxu0 0.0
    %65 = vmatpush1.msra.mxu0 %v37
    %66 = vmatprep.subr.mxu0 0.0
    %67 = vmatpush1.msra.mxu0 %v38
    %68 = vmatprep.subr.mxu0 0.0
    %69 = vmatpush1.msra.mxu0 %v39
    %70 = vmatprep.subr.mxu0 0.0
    %71 = vmatpush1.msra.mxu0 %v40
    %72 = vmatprep.subr.mxu0 0.0
    %73 = vmatpush1.msra.mxu0 %v41
    %74 = vmatprep.subr.mxu0 0.0
    %75 = vmatpush1.msra.mxu0 0.0
    %76 = vmatprep.subr.mxu0 0.0
    %77 = vmatpush1.msra.mxu0 0.0
    %78 = vmatprep.subr.mxu0 0.0
    %79 = vmatpush1.msra.mxu0 0.0
    %80 = vmatprep.subr.mxu0 0.0
    %81 = vmatpush1.msra.mxu0 0.0
    %82 = vmatprep.subr.mxu0 0.0
    %83 = vmatpush1.msra.mxu0 0.0
    %84 = vmatprep.subr.mxu0 0.0
    %85 = vmatpush1.msra.mxu0 0.0
    %86 = vmatprep.subr.mxu0 0.0
    %87 = vmatpush1.msra.mxu0 0.0
    %88 = vmatprep.subr.mxu0 0.0
    %89 = vmatpush1.msra.mxu0 0.0
    %90 = vmatprep.subr.mxu0 0.0
    %91 = vmatpush1.msra.mxu0 0.0
    %92 = vmatprep.subr.mxu0 0.0
    %93 = vmatpush1.msra.mxu0 0.0
    %94 = vmatprep.subr.mxu0 0.0
    %95 = vmatpush1.msra.mxu0 0.0
    %96 = vmatprep.subr.mxu0 0.0
    %97 = vmatpush1.msra.mxu0 0.0
    %98 = vmatprep.subr.mxu0 0.0
    %99 = vmatpush1.msra.mxu0 0.0
    %100 = vmatprep.subr.mxu0 0.0
    %101 = vmatpush1.msra.mxu0 0.0
    %102 = vmatprep.subr.mxu0 0.0
    %103 = vmatpush1.msra.mxu0 0.0
    %104 = vmatprep.subr.mxu0 0.0
    %105 = vmatpush1.msra.mxu0 0.0
    %106 = vmatprep.mubr.f32.mxu0 0.0
    %107 = vmatmul.mubr.f32.gmra.mrb[0].mxu0 %v18
    %v108 = vpop.f32.mrb[0].mxu0
    %v109 = vadd.f32 0.0, %v108
    %v110 = vpop.f32.mrb[0].mxu0
    %111 = vmatprep.mubr.f32.mxu0 0.0
    %112 = vmatmul.mubr.f32.gmra.mrb[0].mxu0 %v19
    %v113 = vpop.f32.mrb[0].mxu0
    %v114 = vadd.f32 0.0, %v113
    %v115 = vpop.f32.mrb[0].mxu0
    %116 = vmatprep.mubr.f32.mxu0 0.0
    %117 = vmatmul.mubr.f32.gmra.mrb[0].mxu0 %v20
    %v118 = vpop.f32.mrb[0].mxu0
    %v119 = vadd.f32 0.0, %v118
    %v120 = vpop.f32.mrb[0].mxu0
    %121 = vmatprep.mubr.f32.mxu0 0.0
    %122 = vmatmul.mubr.f32.gmra.mrb[0].mxu0 %v21
    %v123 = vpop.f32.mrb[0].mxu0
    %v124 = vadd.f32 0.0, %v123
    %v125 = vpop.f32.mrb[0].mxu0
    %126 = vmatprep.mubr.f32.mxu0 0.0
    %127 = vmatmul.mubr.f32.gmra.mrb[0].mxu0 %v22
    %v128 = vpop.f32.mrb[0].mxu0
    %v129 = vadd.f32 0.0, %v128
    %v130 = vpop.f32.mrb[0].mxu0
    %131 = vmatprep.mubr.f32.mxu0 0.0
    %132 = vmatmul.mubr.f32.gmra.mrb[0].mxu0 %v23
    %v133 = vpop.f32.mrb[0].mxu0
    %v134 = vadd.f32 0.0, %v133
    %v135 = vpop.f32.mrb[0].mxu0
    %136 = vmatprep.mubr.f32.mxu0 0.0
    %137 = vmatmul.mubr.f32.gmra.mrb[0].mxu0 %v24
    %v138 = vpop.f32.mrb[0].mxu0
    %v139 = vadd.f32 0.0, %v138
    %v140 = vpop.f32.mrb[0].mxu0
    %141 = vmatprep.mubr.f32.mxu0 0.0
    %142 = vmatmul.mubr.f32.gmra.mrb[0].mxu0 %v25
    %v143 = vpop.f32.mrb[0].mxu0
    %v144 = vadd.f32 0.0, %v143
    %v145 = vpop.f32.mrb[0].mxu0
    %146 = vdwg.mxu0
    %v147 = vtanh.pop %v109
    %v148 = vtanh.pop %v114
    %v149 = vtanh.pop %v119
    %v150 = vtanh.pop %v124
    %v151 = vtanh.pop %v129
    %v152 = vtanh.pop %v134
    %v153 = vtanh.pop %v139
    %v154 = vtanh.pop %v144
    %v155 = vld [vmem:[%s2] sm:$0xff]
    %v156 = vld [vmem:[%s2 + $0x8] sm:$0xff]
    %v157 = vld [vmem:[%s2 + $0x10] sm:$0xff]
    %v158 = vld [vmem:[%s2 + $0x18] sm:$0xff]
    %v159 = vld [vmem:[%s2 + $0x20] sm:$0xff]
    %v160 = vld [vmem:[%s2 + $0x28] sm:$0xff]
    %v161 = vld [vmem:[%s2 + $0x30] sm:$0xff]
    %v162 = vld [vmem:[%s2 + $0x38] sm:$0xff]
    %v163 = vld [vmem:[%s3] sm:$0x1]
    %v165 = vlaneseq
    %v166 = vshrl.u32 %v165, 7
    %v167 = vsub.s32 0, %v166
    %v168 = vrot.slane %v163, %v167
    %vm170 = vcmask 523264
    %v172 = vsel %vm170, %v147, 0
    %v175 = vsel %vm170, %v148, 0
    %v178 = vsel %vm170, %v149, 0
    %v181 = vsel %vm170, %v150, 0
    %v184 = vsel %vm170, %v151, 0
    %v187 = vsel %vm170, %v152, 0
    %v190 = vsel %vm170, %v153, 0
    %v193 = vsel %vm170, %v154, 0
    %195 = vmatprep.subr.mxu0 0.0
    %196 = vmatpush1.msra.mxu0 %v155
    %197 = vmatprep.subr.mxu0 0.0
    %198 = vmatpush1.msra.mxu0 %v156
    %199 = vmatprep.subr.mxu0 0.0
    %200 = vmatpush1.msra.mxu0 %v157
    %201 = vmatprep.subr.mxu0 0.0
    %202 = vmatpush1.msra.mxu0 %v158
    %203 = vmatprep.subr.mxu0 0.0
    %204 = vmatpush1.msra.mxu0 %v159
    %205 = vmatprep.subr.mxu0 0.0
    %206 = vmatpush1.msra.mxu0 %v160
    %207 = vmatprep.subr.mxu0 0.0
    %208 = vmatpush1.msra.mxu0 %v161
    %209 = vmatprep.subr.mxu0 0.0
    %210 = vmatpush1.msra.mxu0 %v162
    %211 = vmatprep.subr.mxu0 0.0
    %212 = vmatpush1.msra.mxu0 0.0
    %213 = vmatprep.subr.mxu0 0.0
    %214 = vmatpush1.msra.mxu0 0.0
    %215 = vmatprep.subr.mxu0 0.0
    %216 = vmatpush1.msra.mxu0 0.0
    %217 = vmatprep.subr.mxu0 0.0
    %218 = vmatpush1.msra.mxu0 0.0
    %219 = vmatprep.subr.mxu0 0.0
    %220 = vmatpush1.msra.mxu0 0.0
    %221 = vmatprep.subr.mxu0 0.0
    %222 = vmatpush1.msra.mxu0 0.0
    %223 = vmatprep.subr.mxu0 0.0
    %224 = vmatpush1.msra.mxu0 0.0
    %225 = vmatprep.subr.mxu0 0.0
    %226 = vmatpush1.msra.mxu0 0.0
    %227 = vmatprep.subr.mxu0 0.0
    %228 = vmatpush1.msra.mxu0 0.0
    %229 = vmatprep.subr.mxu0 0.0
    %230 = vmatpush1.msra.mxu0 0.0
    %231 = vmatprep.subr.mxu0 0.0
    %232 = vmatpush1.msra.mxu0 0.0
    %233 = vmatprep.subr.mxu0 0.0
    %234 = vmatpush1.msra.mxu0 0.0
    %235 = vmatprep.subr.mxu0 0.0
    %236 = vmatpush1.msra.mxu0 0.0
    %237 = vmatprep.subr.mxu0 0.0
    %238 = vmatpush1.msra.mxu0 0.0
    %239 = vmatprep.subr.mxu0 0.0
    %240 = vmatpush1.msra.mxu0 0.0
    %241 = vmatprep.subr.mxu0 0.0
    %242 = vmatpush1.msra.mxu0 0.0
    %243 = vmatprep.subr.mxu0 0.0
    %244 = vmatpush1.msra.mxu0 0.0
    %245 = vmatprep.subr.mxu0 0.0
    %246 = vmatpush1.msra.mxu0 0.0
    %247 = vmatprep.subr.mxu0 0.0
    %248 = vmatpush1.msra.mxu0 0.0
    %249 = vmatprep.subr.mxu0 0.0
    %250 = vmatpush1.msra.mxu0 0.0
    %251 = vmatprep.subr.mxu0 0.0
    %252 = vmatpush1.msra.mxu0 0.0
    %253 = vmatprep.subr.mxu0 0.0
    %254 = vmatpush1.msra.mxu0 0.0
    %255 = vmatprep.subr.mxu0 0.0
    %256 = vmatpush1.msra.mxu0 0.0
    %257 = vmatprep.subr.mxu0 0.0
    %258 = vmatpush1.msra.mxu0 0.0
    %259 = vmatprep.mubr.f32.mxu0 0.0
    %260 = vmatmul.mubr.f32.gmra.mrb[0].mxu0 %v172
    %v261 = vpop.f32.mrb[0].mxu0
    %v262 = vadd.f32 %v168, %v261
    %v263 = vpop.f32.mrb[0].mxu0
    %264 = vmatprep.mubr.f32.mxu0 0.0
    %265 = vmatmul.mubr.f32.gmra.mrb[0].mxu0 %v175
    %v266 = vpop.f32.mrb[0].mxu0
    %v267 = vadd.f32 %v168, %v266
    %v268 = vpop.f32.mrb[0].mxu0
    %269 = vmatprep.mubr.f32.mxu0 0.0
    %270 = vmatmul.mubr.f32.gmra.mrb[0].mxu0 %v178
    %v271 = vpop.f32.mrb[0].mxu0
    %v272 = vadd.f32 %v168, %v271
    %v273 = vpop.f32.mrb[0].mxu0
    %274 = vmatprep.mubr.f32.mxu0 0.0
    %275 = vmatmul.mubr.f32.gmra.mrb[0].mxu0 %v181
    %v276 = vpop.f32.mrb[0].mxu0
    %v277 = vadd.f32 %v168, %v276
    %v278 = vpop.f32.mrb[0].mxu0
    %279 = vmatprep.mubr.f32.mxu0 0.0
    %280 = vmatmul.mubr.f32.gmra.mrb[0].mxu0 %v184
    %v281 = vpop.f32.mrb[0].mxu0
    %v282 = vadd.f32 %v168, %v281
    %v283 = vpop.f32.mrb[0].mxu0
    %284 = vmatprep.mubr.f32.mxu0 0.0
    %285 = vmatmul.mubr.f32.gmra.mrb[0].mxu0 %v187
    %v286 = vpop.f32.mrb[0].mxu0
    %v287 = vadd.f32 %v168, %v286
    %v288 = vpop.f32.mrb[0].mxu0
    %289 = vmatprep.mubr.f32.mxu0 0.0
    %290 = vmatmul.mubr.f32.gmra.mrb[0].mxu0 %v190
    %v291 = vpop.f32.mrb[0].mxu0
    %v292 = vadd.f32 %v168, %v291
    %v293 = vpop.f32.mrb[0].mxu0
    %294 = vmatprep.mubr.f32.mxu0 0.0
    %295 = vmatmul.mubr.f32.gmra.mrb[0].mxu0 %v193
    %v296 = vpop.f32.mrb[0].mxu0
    %v297 = vadd.f32 %v168, %v296
    %v298 = vpop.f32.mrb[0].mxu0
    %299 = vdwg.mxu0
    %300 = vst [vmem:[#allocation2] sm:$0xff] %v262
    %301 = vst [vmem:[#allocation2 + $0x8] sm:$0xff] %v267
    %302 = vst [vmem:[#allocation2 + $0x10] sm:$0xff] %v272
    %303 = vst [vmem:[#allocation2 + $0x18] sm:$0xff] %v277
    %304 = vst [vmem:[#allocation2 + $0x20] sm:$0xff] %v282
    %305 = vst [vmem:[#allocation2 + $0x28] sm:$0xff] %v287
    %306 = vst [vmem:[#allocation2 + $0x30] sm:$0xff] %v292
    %307 = vst [vmem:[#allocation2 + $0x38] sm:$0xff] %v297
    // Predicated region
    $region18: #{tpu_custom_call.1} parent=1 // pred_check
      _
    $region19: #{tpu_custom_call.1} parent=1 // pred_check_branch
      %309 = sbr.rel (0) target = $region21
    $region20: #{tpu_custom_call.1} parent=1 // pred_region
      %s311 = ssub.s32 1024, 1024
      %312 = vsyncadd [#allocation3], %s311
      %s313 = sshll.u32 [#allocation2], 4
      %s314 = int_to_ptr.vmem [resolvable:$true] %s313
      %319 = dma.vmem_to_hbm [thread:$0]  %s314, 1024, %s4, [#allocation3], 128, 128, 8
    $region21: #{tpu_custom_call.1} parent=1 // pred_fallthru
      _
    // Predicated region
    $region22: #{tpu_custom_call.1} parent=1 // pred_check
      _
    $region23: #{tpu_custom_call.1} parent=1 // pred_check_branch
      %321 = sbr.rel (0) target = $region25
    $region24: #{tpu_custom_call.1} parent=1 // pred_region
      %322 = dma.done [#allocation3], 1024
    $region25: #{tpu_custom_call.1} parent=1 // pred_fallthru
      _
    %323 = vsyncpa [#allocation3], 1

</llo_original>
